<compile_context>
chip_gen: v6e
topology: v6e:2x2x1
jax: 0.10.0
libtpu: 0.0.40
codegen_flags: <defaults>
</compile_context>

<pallas_src>
import jax
import jax.numpy as jnp
from jax.experimental import pallas as pl
from jax.experimental.pallas import tpu as pltpu


def _max_cos_sim_kernel(xp_ref, sh_ref, o_ref):
    # xp_ref: (1, B, Lp)   zero-padded sequences for this channel, Lp = L+S-1
    # sh_ref: (1, K, S)    L2-normalized shapelets for this channel
    # o_ref:  (1, B, K, L) ReLU(cosine similarity), L on the lane axis
    xp = xp_ref[0]          # (B, Lp)
    sh = sh_ref[0]          # (K, S)
    B, Lp = xp.shape
    K, S = sh.shape
    L = Lp - S + 1

    # S-tap sliding accumulation (S is small & static -> fully unrolled taps):
    #   nrm2[b, l]   = sum_s xp[b, l + s]^2          (window squared norm)
    #   sim[b, k, l] = sum_s sh[k, s] * xp[b, l + s] (un-normalized similarity)
    nrm2 = jnp.zeros((B, L), dtype=jnp.float32)
    sim = jnp.zeros((B, K, L), dtype=jnp.float32)
    for s in range(S):
        xs = xp[:, s:s + L]                                         # (B, L)
        nrm2 = nrm2 + xs * xs
        sim = sim + sh[:, s:s + 1][None, :, :] * xs[:, None, :]     # (B, K, L)

    # Normalize by the window norm (clamped at 1e-8), then ReLU.
    inv = pl.reciprocal(jnp.maximum(jnp.sqrt(nrm2), 1e-8))          # (B, L)
    o_ref[0] = jnp.maximum(sim * inv[:, None, :], 0.0)


def max_cosine_similarity_block(x, shapelets):
    """x: (B, C, L) float32, shapelets: (C, K, S) float32 -> (B, C, L, K) float32."""
    B, C, L = x.shape
    Cs, K, S = shapelets.shape
    assert Cs == C, "channel mismatch"
    Lp = L + S - 1

    x = x.astype(jnp.float32)
    shapelets = shapelets.astype(jnp.float32)

    # Hoisted: shapelet L2 normalization (tiny: C*K*S elements, channel-only).
    sh_nrm = jnp.sqrt(jnp.sum(shapelets * shapelets, axis=-1, keepdims=True))
    sh_n = shapelets / jnp.maximum(sh_nrm, 1e-8)

    # Zero-pad along length (same as F.pad in the module) and put the channel
    # axis first so each grid step sees a full (B, Lp) trailing tile.
    pad_lo = (S - 1) // 2
    pad_hi = pad_lo + (S - 1) % 2
    x_pad = jnp.pad(x, ((0, 0), (0, 0), (pad_lo, pad_hi)))          # (B, C, Lp)
    x_cbl = jnp.transpose(x_pad, (1, 0, 2))                          # (C, B, Lp)

    out_cbkl = pl.pallas_call(
        _max_cos_sim_kernel,
        out_shape=jax.ShapeDtypeStruct((C, B, K, L), jnp.float32),
        grid_spec=pltpu.PrefetchScalarGridSpec(
            num_scalar_prefetch=0,
            grid=(C,),                       # one step per channel; all B, L per step
            in_specs=[
                pl.BlockSpec((1, B, Lp), lambda c: (c, 0, 0)),
                pl.BlockSpec((1, K, S), lambda c: (c, 0, 0)),
            ],
            out_specs=pl.BlockSpec((1, B, K, L), lambda c: (c, 0, 0, 0)),
        ),
        compiler_params=pltpu.CompilerParams(
            dimension_semantics=("parallel",)),   # C>=2 shards across v7x TCs
    )(x_cbl, sh_n)

    # Back to the module's (B, C, L, K) layout (pure layout plumbing).
    return jnp.transpose(out_cbkl, (1, 0, 3, 2))


def _reference_forward(x, shapelets):
    """Pure-JAX port of the PyTorch forward for validation."""
    B, C, L = x.shape
    _, K, S = shapelets.shape
    pad_lo = (S - 1) // 2
    pad_hi = pad_lo + (S - 1) % 2
    x_pad = jnp.pad(x, ((0, 0), (0, 0), (pad_lo, pad_hi)))
    idx = jnp.arange(L)[:, None] + jnp.arange(S)[None, :]
    xw = x_pad[:, :, idx]  # (B, C, L, S)
    xw = xw / jnp.maximum(jnp.linalg.norm(xw, axis=-1, keepdims=True), 1e-8)
    sh = shapelets / jnp.maximum(
        jnp.linalg.norm(shapelets, axis=-1, keepdims=True), 1e-8)
    out = jnp.einsum("bcls,cks->bclk", xw, sh)
    return jnp.maximum(out, 0.0)


if __name__ == "__main__":
    # Module hyperparameters (deterministic, synthetic — no checkpoint load).
    B, C, L = 2, 4, 16          # batch, in_channels, sequence length
    S, K = 5, 8                 # shapelets_size, num_shapelets

    key = jax.random.PRNGKey(0)
    k_sh, k_x = jax.random.split(key)
    shapelets = jax.random.normal(k_sh, (C, K, S), dtype=jnp.float32)  # nn.Parameter ~ randn
    x = jax.random.normal(k_x, (B, C, L), dtype=jnp.float32)

    out = max_cosine_similarity_block(x, shapelets)
    out = jax.block_until_ready(out)

    ref = _reference_forward(x, shapelets)
    assert out.shape == (B, C, L, K)
    assert out.dtype == jnp.float32
    assert jnp.allclose(out, ref, atol=1e-5, rtol=1e-5), "mismatch vs reference"

    print("KERNEL_OK")
</pallas_src>

<mosaic_0001>
module attributes {stable_mosaic.version = 11 : i64} {
  func.func @_max_cos_sim_kernel(%arg0: i32, %arg1: memref<1x2x20xf32, #tpu.memory_space<vmem>>, %arg2: memref<1x8x5xf32, #tpu.memory_space<vmem>>, %arg3: memref<1x2x8x16xf32, #tpu.memory_space<vmem>>) attributes {dimension_semantics = [#tpu.dimension_semantics<parallel>], iteration_bounds = array<i64: 4>, scalar_prefetch = 0 : i64, scratch_operands = 0 : i64, tpu.core_type = #tpu.core_type<tc>, window_params = [{transform_indices = @transform_0, window_bounds = array<i64: 1, 2, 20>}, {transform_indices = @transform_1, window_bounds = array<i64: 1, 8, 5>}, {transform_indices = @transform_2, window_bounds = array<i64: 1, 2, 8, 16>}]} {
    %c0 = arith.constant 0 : index
    %c0_0 = arith.constant 0 : index
    %c0_1 = arith.constant 0 : index
    %0 = vector.load %arg1[%c0, %c0_0, %c0_1] : memref<1x2x20xf32, #tpu.memory_space<vmem>>, vector<1x2x20xf32>
    %1 = vector.shape_cast %0 : vector<1x2x20xf32> to vector<2x20xf32>
    %c0_2 = arith.constant 0 : index
    %c0_3 = arith.constant 0 : index
    %c0_4 = arith.constant 0 : index
    %2 = vector.load %arg2[%c0_2, %c0_3, %c0_4] : memref<1x8x5xf32, #tpu.memory_space<vmem>>, vector<1x8x5xf32>
    %3 = vector.shape_cast %2 : vector<1x8x5xf32> to vector<8x5xf32>
    %cst = arith.constant 0.000000e+00 : f32
    %4 = vector.broadcast %cst : f32 to vector<2x16xf32>
    %cst_5 = arith.constant 0.000000e+00 : f32
    %5 = vector.broadcast %cst_5 : f32 to vector<2x8x16xf32>
    %6 = vector.extract_strided_slice %1 {offsets = [0, 0], sizes = [2, 16], strides = [1, 1]} : vector<2x20xf32> to vector<2x16xf32>
    %7 = arith.mulf %6, %6 : vector<2x16xf32>
    %8 = arith.addf %4, %7 : vector<2x16xf32>
    %9 = vector.extract_strided_slice %3 {offsets = [0, 0], sizes = [8, 1], strides = [1, 1]} : vector<8x5xf32> to vector<8x1xf32>
    %10 = vector.shape_cast %9 : vector<8x1xf32> to vector<1x8x1xf32>
    %11 = vector.shape_cast %6 : vector<2x16xf32> to vector<2x1x16xf32>
    %12 = vector.broadcast %10 : vector<1x8x1xf32> to vector<2x8x16xf32>
    %13 = vector.broadcast %11 : vector<2x1x16xf32> to vector<2x8x16xf32>
    %14 = arith.mulf %12, %13 : vector<2x8x16xf32>
    %15 = arith.addf %5, %14 : vector<2x8x16xf32>
    %16 = vector.extract_strided_slice %1 {offsets = [0, 1], sizes = [2, 16], strides = [1, 1]} : vector<2x20xf32> to vector<2x16xf32>
    %17 = arith.mulf %16, %16 : vector<2x16xf32>
    %18 = arith.addf %8, %17 : vector<2x16xf32>
    %19 = vector.extract_strided_slice %3 {offsets = [0, 1], sizes = [8, 1], strides = [1, 1]} : vector<8x5xf32> to vector<8x1xf32>
    %20 = vector.shape_cast %19 : vector<8x1xf32> to vector<1x8x1xf32>
    %21 = vector.shape_cast %16 : vector<2x16xf32> to vector<2x1x16xf32>
    %22 = vector.broadcast %20 : vector<1x8x1xf32> to vector<2x8x16xf32>
    %23 = vector.broadcast %21 : vector<2x1x16xf32> to vector<2x8x16xf32>
    %24 = arith.mulf %22, %23 : vector<2x8x16xf32>
    %25 = arith.addf %15, %24 : vector<2x8x16xf32>
    %26 = vector.extract_strided_slice %1 {offsets = [0, 2], sizes = [2, 16], strides = [1, 1]} : vector<2x20xf32> to vector<2x16xf32>
    %27 = arith.mulf %26, %26 : vector<2x16xf32>
    %28 = arith.addf %18, %27 : vector<2x16xf32>
    %29 = vector.extract_strided_slice %3 {offsets = [0, 2], sizes = [8, 1], strides = [1, 1]} : vector<8x5xf32> to vector<8x1xf32>
    %30 = vector.shape_cast %29 : vector<8x1xf32> to vector<1x8x1xf32>
    %31 = vector.shape_cast %26 : vector<2x16xf32> to vector<2x1x16xf32>
    %32 = vector.broadcast %30 : vector<1x8x1xf32> to vector<2x8x16xf32>
    %33 = vector.broadcast %31 : vector<2x1x16xf32> to vector<2x8x16xf32>
    %34 = arith.mulf %32, %33 : vector<2x8x16xf32>
    %35 = arith.addf %25, %34 : vector<2x8x16xf32>
    %36 = vector.extract_strided_slice %1 {offsets = [0, 3], sizes = [2, 16], strides = [1, 1]} : vector<2x20xf32> to vector<2x16xf32>
    %37 = arith.mulf %36, %36 : vector<2x16xf32>
    %38 = arith.addf %28, %37 : vector<2x16xf32>
    %39 = vector.extract_strided_slice %3 {offsets = [0, 3], sizes = [8, 1], strides = [1, 1]} : vector<8x5xf32> to vector<8x1xf32>
    %40 = vector.shape_cast %39 : vector<8x1xf32> to vector<1x8x1xf32>
    %41 = vector.shape_cast %36 : vector<2x16xf32> to vector<2x1x16xf32>
    %42 = vector.broadcast %40 : vector<1x8x1xf32> to vector<2x8x16xf32>
    %43 = vector.broadcast %41 : vector<2x1x16xf32> to vector<2x8x16xf32>
    %44 = arith.mulf %42, %43 : vector<2x8x16xf32>
    %45 = arith.addf %35, %44 : vector<2x8x16xf32>
    %46 = vector.extract_strided_slice %1 {offsets = [0, 4], sizes = [2, 16], strides = [1, 1]} : vector<2x20xf32> to vector<2x16xf32>
    %47 = arith.mulf %46, %46 : vector<2x16xf32>
    %48 = arith.addf %38, %47 : vector<2x16xf32>
    %49 = vector.extract_strided_slice %3 {offsets = [0, 4], sizes = [8, 1], strides = [1, 1]} : vector<8x5xf32> to vector<8x1xf32>
    %50 = vector.shape_cast %49 : vector<8x1xf32> to vector<1x8x1xf32>
    %51 = vector.shape_cast %46 : vector<2x16xf32> to vector<2x1x16xf32>
    %52 = vector.broadcast %50 : vector<1x8x1xf32> to vector<2x8x16xf32>
    %53 = vector.broadcast %51 : vector<2x1x16xf32> to vector<2x8x16xf32>
    %54 = arith.mulf %52, %53 : vector<2x8x16xf32>
    %55 = arith.addf %45, %54 : vector<2x8x16xf32>
    %56 = math.sqrt %48 : vector<2x16xf32>
    %cst_6 = arith.constant 9.99999993E-9 : f32
    %57 = vector.broadcast %cst_6 : f32 to vector<2x16xf32>
    %58 = arith.maximumf %56, %57 : vector<2x16xf32>
    %59 = tpu.reciprocal %58 : vector<2x16xf32> -> vector<2x16xf32>
    %60 = vector.shape_cast %59 : vector<2x16xf32> to vector<2x1x16xf32>
    %61 = vector.broadcast %60 : vector<2x1x16xf32> to vector<2x8x16xf32>
    %62 = arith.mulf %55, %61 : vector<2x8x16xf32>
    %cst_7 = arith.constant 0.000000e+00 : f32
    %63 = vector.broadcast %cst_7 : f32 to vector<2x8x16xf32>
    %64 = arith.maximumf %62, %63 : vector<2x8x16xf32>
    %c0_8 = arith.constant 0 : index
    %c0_9 = arith.constant 0 : index
    %c0_10 = arith.constant 0 : index
    %c0_11 = arith.constant 0 : index
    %65 = vector.load %arg3[%c0_8, %c0_9, %c0_10, %c0_11] : memref<1x2x8x16xf32, #tpu.memory_space<vmem>>, vector<1x2x8x16xf32>
    %66 = vector.shape_cast %65 : vector<1x2x8x16xf32> to vector<2x8x16xf32>
    %67 = vector.shape_cast %64 : vector<2x8x16xf32> to vector<1x2x8x16xf32>
    tpu.vector_store %arg3[%c0_8, %c0_9, %c0_10, %c0_11], %67 {strides = array<i32>} : memref<1x2x8x16xf32, #tpu.memory_space<vmem>>, vector<1x2x8x16xf32>,
    return
  }
  func.func @transform_0(%arg0: i32) -> (i32, i32, i32) {
    %c0_i32 = arith.constant 0 : i32
    %c0_i32_0 = arith.constant 0 : i32
    %c0_i32_1 = arith.constant 0 : i32
    return %arg0, %c0_i32, %c0_i32_0 : i32, i32, i32
  }
  func.func @transform_1(%arg0: i32) -> (i32, i32, i32) {
    %c0_i32 = arith.constant 0 : i32
    %c0_i32_0 = arith.constant 0 : i32
    %c0_i32_1 = arith.constant 0 : i32
    return %arg0, %c0_i32, %c0_i32_0 : i32, i32, i32
  }
  func.func @transform_2(%arg0: i32) -> (i32, i32, i32, i32) {
    %c0_i32 = arith.constant 0 : i32
    %c0_i32_0 = arith.constant 0 : i32
    %c0_i32_1 = arith.constant 0 : i32
    %c0_i32_2 = arith.constant 0 : i32
    return %arg0, %c0_i32, %c0_i32_0, %c0_i32_1 : i32, i32, i32, i32
  }
}

</mosaic_0001>

<llo_original>
// kernel: tpu_custom_call.1
$region0: #{tpu_custom_call.1}
  #allocation0 [shape = 'u32[]', space=smem, size = 0x4, offset = 0x4, fixed_abs, tag = 'smem constant byte address 0x4 - core index']
  #allocation1 [shape = 'u32[144,128]{1,0:T(1,128)}', space=vmem, size = 0x12000, scoped, tag = 'internal scratch']
  %s0 = inlined_call_operand.vmem [shape: f32[4,2,20], index: 0, kind: input, shape index: {}]
  %s1 = inlined_call_operand.vmem [shape: f32[4,8,5], index: 1, kind: input, shape index: {}]
  %s2 = inlined_call_operand.hbm [shape: f32[4,2,8,16], index: 2, kind: output, shape index: {}]
  %s3 = sld [smem:[#allocation0]]
  $region41: #{tpu_custom_call.1} parent=0
    _
  %s5 = ssub.s32 1, %s3
  %s6 = scalar_select 0, %s5, %s3
  $region1: #{tpu_custom_call.1} parent=0
    #allocation2 [shape = 'u8[16384]{0}', space=vmem, size = 0x4000, scoped, tag = 'output window, operand 0']
    #allocation3 [shape = 's32[2]{0}', space=sflag, size = 0x8, scoped, tag = 'scoped memory for tpu_custom_call.1']
    %7 = vsyncpa [#allocation3], 0
    %s8 = scalar_lea.sflag [#allocation3], 1
    %9 = vsyncpa %s8, 0
    loop: start=0, step=1, limit=6
    $region2: #{tpu_custom_call.1} parent=1 // loop_pre_header
      _
    $region3: #{tpu_custom_call.1} parent=1 // loop_header
      %s11 = sphi 0, %s15
      %p12 = scmp.ge.s32.totalorder %s11, 6
      %s21 = sphi 0, %s23
      %s24 = sphi 0, %s21
      %s25 = sphi 0, %s24
      %s41 = sphi 0, %s25
      %s47 = sphi 0, %s49
      %s50 = sphi 0, %s47
      %s51 = sphi 0, %s50
      %s67 = sphi 0, %s51
      %s73 = sphi 0, %s75
      %s76 = sphi 0, %s73
      %s77 = sphi 0, %s76
      %s93 = sphi 0, %s77
    $region4: #{tpu_custom_call.1} parent=1 // loop_header_branch
      %14 = sbr.rel (%p12) target = $region8
    $region5: #{tpu_custom_call.1} parent=1 // loop_body
      %s16 = ssub.s32 %s11, 1
      %s17 = ssub.s32 %s11, 2
      %s18 = sadd.s32 %s11, 1
      %s19 = ssub.s32 %s11, %s18
      %p20 = scmp.eq.s32.totalorder %s19, 0
      %s22 = sadd.s32 %s21, 1
      %s23 = scalar_select %p20, %s21, %s22
      %p26 = pneg %p20
      %p27 = scmp.eq.s32.totalorder %s11, 3
      %p28 = por %p26, %p27
      %p29 = scmp.ne.s32.totalorder %s21, %s24
      %p30 = scmp.eq.s32.totalorder %s11, 0
      %p31 = por %p29, %p30
      %p32 = scmp.ne.s32.totalorder %s21, %s24
      %p33 = scmp.eq.s32.totalorder %s16, 3
      %p34 = por %p32, %p33
      %p35 = scmp.ne.s32.totalorder %s24, %s25
      %p36 = scmp.eq.s32.totalorder %s16, 0
      %p37 = por %p35, %p36
      %p38 = scmp.ne.s32.totalorder %s24, %s25
      %p39 = scmp.eq.s32.totalorder %s17, 3
      %p40 = por %p38, %p39
      %p42 = scmp.ne.s32.totalorder %s25, %s41
      %p43 = scmp.eq.s32.totalorder %s17, 0
      %p44 = por %p42, %p43
      %s45 = ssub.s32 %s11, %s18
      %p46 = scmp.eq.s32.totalorder %s45, 0
      %s48 = sadd.s32 %s47, 1
      %s49 = scalar_select %p46, %s47, %s48
      %p52 = pneg %p46
      %p53 = scmp.eq.s32.totalorder %s11, 3
      %p54 = por %p52, %p53
      %p55 = scmp.ne.s32.totalorder %s47, %s50
      %p56 = scmp.eq.s32.totalorder %s11, 0
      %p57 = por %p55, %p56
      %p58 = scmp.ne.s32.totalorder %s47, %s50
      %p59 = scmp.eq.s32.totalorder %s16, 3
      %p60 = por %p58, %p59
      %p61 = scmp.ne.s32.totalorder %s50, %s51
      %p62 = scmp.eq.s32.totalorder %s16, 0
      %p63 = por %p61, %p62
      %p64 = scmp.ne.s32.totalorder %s50, %s51
      %p65 = scmp.eq.s32.totalorder %s17, 3
      %p66 = por %p64, %p65
      %p68 = scmp.ne.s32.totalorder %s51, %s67
      %p69 = scmp.eq.s32.totalorder %s17, 0
      %p70 = por %p68, %p69
      %s71 = ssub.s32 %s11, %s18
      %p72 = scmp.eq.s32.totalorder %s71, 0
      %s74 = sadd.s32 %s73, 1
      %s75 = scalar_select %p72, %s73, %s74
      %p78 = pneg %p72
      %p79 = scmp.eq.s32.totalorder %s11, 3
      %p80 = por %p78, %p79
      %p81 = scmp.ne.s32.totalorder %s73, %s76
      %p82 = scmp.eq.s32.totalorder %s11, 0
      %p83 = por %p81, %p82
      %p84 = scmp.ne.s32.totalorder %s73, %s76
      %p85 = scmp.eq.s32.totalorder %s16, 3
      %p86 = por %p84, %p85
      %p87 = scmp.ne.s32.totalorder %s76, %s77
      %p88 = scmp.eq.s32.totalorder %s16, 0
      %p89 = por %p87, %p88
      %p90 = scmp.ne.s32.totalorder %s76, %s77
      %p91 = scmp.eq.s32.totalorder %s17, 3
      %p92 = por %p90, %p91
      %p94 = scmp.ne.s32.totalorder %s77, %s93
      %p95 = scmp.eq.s32.totalorder %s17, 0
      %p96 = por %p94, %p95
      %p97 = scmp.le.s32.totalorder 1, %s11
      %p98 = scmp.lt.s32.totalorder %s11, 5
      %p99 = pnand %p97, %p98
      %p100 = pneg %p99
      // Predicated region
      $region9: #{tpu_custom_call.1} parent=5 // pred_check
        _
      $region10: #{tpu_custom_call.1} parent=5 // pred_check_branch
        %102 = sbr.rel (%p99) target = $region12
      $region11: #{tpu_custom_call.1} parent=5 // pred_region
        %s103 = ssub.s32 %s11, 1
      $region12: #{tpu_custom_call.1} parent=5 // pred_fallthru
        _
      %p104 = scmp.lt.s32.totalorder %s11, 4
      // Predicated region
      $region13: #{tpu_custom_call.1} parent=5 // pred_check
        %p105 = pneg %p104
      $region14: #{tpu_custom_call.1} parent=5 // pred_check_branch
        %107 = sbr.rel (%p105) target = $region16
      $region15: #{tpu_custom_call.1} parent=5 // pred_region
        // Predicated region
        $region17: #{tpu_custom_call.1} parent=15 // pred_check
          %p108 = pneg %p31
        $region18: #{tpu_custom_call.1} parent=15 // pred_check_branch
          %110 = sbr.rel (%p108) target = $region20
        $region19: #{tpu_custom_call.1} parent=15 // pred_region
          %p111 = scmp.lt.s32.totalorder %s11, 3
          %s112 = scalar_select %p111, %s11, 3
          %s113 = smul.addr %s112, 2
          %s114 = scalar_lea.vmem %s0, %s113
        $region20: #{tpu_custom_call.1} parent=15 // pred_fallthru
          _
        // Predicated region
        $region21: #{tpu_custom_call.1} parent=15 // pred_check
          %p115 = pneg %p57
        $region22: #{tpu_custom_call.1} parent=15 // pred_check_branch
          %117 = sbr.rel (%p115) target = $region24
        $region23: #{tpu_custom_call.1} parent=15 // pred_region
          %p118 = scmp.lt.s32.totalorder %s11, 3
          %s119 = scalar_select %p118, %s11, 3
          %s120 = smul.addr %s119, 8
          %s121 = scalar_lea.vmem %s1, %s120
        $region24: #{tpu_custom_call.1} parent=15 // pred_fallthru
          _
      $region16: #{tpu_custom_call.1} parent=5 // pred_fallthru
        _
      %p122 = scmp.le.s32.totalorder 1, %s11
      %p123 = scmp.lt.s32.totalorder %s11, 5
      %p124 = pnand %p122, %p123
      %p125 = pneg %p124
      // Predicated region
      $region25: #{tpu_custom_call.1} parent=5 // pred_check
        _
      $region26: #{tpu_custom_call.1} parent=5 // pred_check_branch
        %127 = sbr.rel (%p124) target = $region28
      $region27: #{tpu_custom_call.1} parent=5 // pred_region
        %s128 = ssub.s32 %s11, 1
        %p129 = scmp.lt.s32.totalorder %s16, 3
        %s130 = scalar_select %p129, %s16, 3
        %s131 = smul.addr %s130, 2
        %s132 = scalar_lea.vmem %s0, %s131
        %p133 = pneg %p37
        %p134 = pneg %p34
        %p135 = scmp.lt.s32.totalorder %s16, 3
        %s136 = scalar_select %p135, %s16, 3
        %s137 = smul.addr %s136, 8
        %s138 = scalar_lea.vmem %s1, %s137
        %p139 = pneg %p63
        %p140 = pneg %p60
        %p141 = pneg %p89
        %p142 = pneg %p86
        %s143 = sand.u32 %s76, 1
        %s144 = scalar_lea.sflag [#allocation3], %s143
        %s145 = sand.u32 %s76, 1
        %s146 = smul.addr %s145, 16
        %s147 = scalar_lea.vmem [#allocation2], %s146
        %p148 = scmp.lt.s32.totalorder %s16, 3
        %s149 = scalar_select %p148, %s16, 3
        %s150 = smul.addr %s149, 2
        %s151 = scalar_lea.vmem %s0, %s150
        %p152 = scmp.lt.s32.totalorder %s16, 3
        %s153 = scalar_select %p152, %s16, 3
        %s154 = smul.addr %s153, 8
        %s155 = scalar_lea.vmem %s1, %s154
        %v156 = vld [vmem:[%s151] sm:$0x3]
        %v157 = vld [vmem:[%s155] sm:$0xff]
        %v158 = vmul.f32 %v156, %v156
        %v159 = vadd.f32 %v158, 0.0
        %v162 = vunpack.c.l.s4 1966171168
        %v163 = vunpack.c.0.s8 %v162
        %v164 = vlaneseq
        %v165 = vshrl.u32 %v164, 7
        %v166 = vsub.s32 %v163, %v165
        %v167 = vrot.slane %v156, %v166
        %v168 = vcombine.high %v167, %v167
        %v170 = vunpack.c.l.s4 1966171168
        %v171 = vunpack.c.0.s8 %v170
        %v172 = vlaneseq
        %v173 = vshrl.u32 %v172, 7
        %v174 = vsub.s32 %v171, %v173
        %v175 = vrot.slane %v167, %v174
        %v177 = vunpack.c.l.s4 1966171168
        %v178 = vunpack.c.0.s8 %v177
        %v179 = vlaneseq
        %v180 = vshrl.u32 %v179, 7
        %v181 = vsub.s32 %v178, %v180
        %v182 = vrot.slane %v168, %v181
        %184 = vset.pattern.permute.xlu0 0
        %185 = vperm.xlu0 %184, %v157
        %v186 = vpop.permute.xlu0 %185
        %v188 = vlaneseq
        %v189 = vshrl.u32 %v188, 7
        %v190 = vsub.s32 0, %v189
        %v191 = vrot.slane %v175, %v190
        %v192 = vlaneseq
        %v193 = vshrl.u32 %v192, 7
        %v194 = vsub.s32 0, %v193
        %v195 = vrot.slane %v182, %v194
        %v198 = vmul.f32 %v186, %v191
        %v199 = vmul.f32 %v186, %v195
        %v200 = vadd.f32 %v198, 0.0
        %v201 = vadd.f32 %v199, 0.0
        %203 = vrot.lane.b32.xlu0 %v158, 127
        %v204 = vpop.permute.xlu0 %203
        %v206 = vadd.f32 %v159, %v204
        %207 = vset.pattern.permute.xlu0 1
        %208 = vperm.xlu0 %207, %v157
        %v209 = vpop.permute.xlu0 %208
        %v211 = vmul.f32 %v209, %v191
        %v212 = vmul.f32 %v209, %v195
        %215 = vrot.lane.b32.xlu0 %v211, 127
        %v216 = vpop.permute.xlu0 %215
        %217 = vrot.lane.b32.xlu0 %v212, 127
        %v218 = vpop.permute.xlu0 %217
        %v221 = vadd.f32 %v200, %v216
        %v222 = vadd.f32 %v201, %v218
        %223 = vrot.lane.b32.xlu0 %v158, 126
        %v224 = vpop.permute.xlu0 %223
        %v226 = vadd.f32 %v206, %v224
        %227 = vset.pattern.permute.xlu0 2
        %228 = vperm.xlu0 %227, %v157
        %v229 = vpop.permute.xlu0 %228
        %v231 = vmul.f32 %v229, %v191
        %v232 = vmul.f32 %v229, %v195
        %235 = vrot.lane.b32.xlu0 %v231, 126
        %v236 = vpop.permute.xlu0 %235
        %237 = vrot.lane.b32.xlu0 %v232, 126
        %v238 = vpop.permute.xlu0 %237
        %v241 = vadd.f32 %v221, %v236
        %v242 = vadd.f32 %v222, %v238
        %243 = vrot.lane.b32.xlu0 %v158, 125
        %v244 = vpop.permute.xlu0 %243
        %v246 = vadd.f32 %v226, %v244
        %247 = vset.pattern.permute.xlu0 3
        %248 = vperm.xlu0 %247, %v157
        %v249 = vpop.permute.xlu0 %248
        %v251 = vmul.f32 %v249, %v191
        %v252 = vmul.f32 %v249, %v195
        %255 = vrot.lane.b32.xlu0 %v251, 125
        %v256 = vpop.permute.xlu0 %255
        %257 = vrot.lane.b32.xlu0 %v252, 125
        %v258 = vpop.permute.xlu0 %257
        %v261 = vadd.f32 %v241, %v256
        %v262 = vadd.f32 %v242, %v258
        %263 = vrot.lane.b32.xlu0 %v158, 124
        %v264 = vpop.permute.xlu0 %263
        %v266 = vadd.f32 %v246, %v264
        %267 = vset.pattern.permute.xlu0 4
        %268 = vperm.xlu0 %267, %v157
        %v269 = vpop.permute.xlu0 %268
        %v271 = vmul.f32 %v269, %v191
        %v272 = vmul.f32 %v269, %v195
        %275 = vrot.lane.b32.xlu0 %v271, 124
        %v276 = vpop.permute.xlu0 %275
        %277 = vrot.lane.b32.xlu0 %v272, 124
        %v278 = vpop.permute.xlu0 %277
        %v281 = vadd.f32 %v261, %v276
        %v282 = vadd.f32 %v262, %v278
        %v283 = vrsqrt.pop %v266
        %v284 = vmul.f32 %v266, %v283
        %vm285 = vcmp.eq.f32.partialorder %v266, inf
        %v286 = vsel %vm285, %v266, %v284
        %vm287 = vcmp.eq.f32.partialorder %v266, 0.0
        %v288 = vand.u32 %v266, 2147483648
        %v289 = vsel %vm287, %v288, %v286
        %v290 = vmax.f32 %v289, 1e-08
        %v291 = vrcp.pop %v290
        %v294 = vunpack.c.l.s4 1966171168
        %v295 = vunpack.c.0.s8 %v294
        %v296 = vlaneseq
        %v297 = vshrl.u32 %v296, 7
        %v298 = vsub.s32 %v295, %v297
        %v299 = vrot.slane %v291, %v298
        %v300 = vcombine.high %v299, %v299
        %v302 = vunpack.c.l.s4 1966171168
        %v303 = vunpack.c.0.s8 %v302
        %v304 = vlaneseq
        %v305 = vshrl.u32 %v304, 7
        %v306 = vsub.s32 %v303, %v305
        %v307 = vrot.slane %v299, %v306
        %v309 = vunpack.c.l.s4 1966171168
        %v310 = vunpack.c.0.s8 %v309
        %v311 = vlaneseq
        %v312 = vshrl.u32 %v311, 7
        %v313 = vsub.s32 %v310, %v312
        %v314 = vrot.slane %v300, %v313
        %v315 = vlaneseq
        %v316 = vshrl.u32 %v315, 7
        %v317 = vsub.s32 0, %v316
        %v318 = vrot.slane %v307, %v317
        %v319 = vlaneseq
        %v320 = vshrl.u32 %v319, 7
        %v321 = vsub.s32 0, %v320
        %v322 = vrot.slane %v314, %v321
        %v325 = vmul.f32 %v281, %v318
        %v326 = vmul.f32 %v282, %v322
        %v327 = vmax.f32 %v325, 0.0
        %v328 = vmax.f32 %v326, 0.0
        %vm329 = vcmask 130048
        %330 = vst.msk [vmem:[%s147] sm:$0xff] %vm329, %v327
        %331 = vst.msk [vmem:[%s147 + $0x8] sm:$0xff] %vm329, %v328
        %s332 = sand.u32 %s76, 1
        %s333 = scalar_lea.sflag [#allocation3], %s332
        %s334 = sand.u32 %s76, 1
        %s335 = smul.addr %s334, 16
        %s336 = scalar_lea.vmem [#allocation2], %s335
        // Predicated region
        $region29: #{tpu_custom_call.1} parent=27 // pred_check
          %p337 = pneg %p86
        $region30: #{tpu_custom_call.1} parent=27 // pred_check_branch
          %339 = sbr.rel (%p337) target = $region32
        $region31: #{tpu_custom_call.1} parent=27 // pred_region
          %s341 = ssub.s32 256, 256
          %342 = vsyncadd %s333, %s341
          %s343 = smul.addr %s16, 2
          %s344 = smul.addr %s343, 128
          %s345 = scalar_lea.hbm %s2, %s344
          %s346 = sshll.u32 %s336, 4
          %s347 = int_to_ptr.vmem [resolvable:$true] %s346
          %352 = dma.vmem_to_hbm [thread:$0]  %s347, 256, %s345, %s333, 128, 128, 8
        $region32: #{tpu_custom_call.1} parent=27 // pred_fallthru
          _
      $region28: #{tpu_custom_call.1} parent=5 // pred_fallthru
        _
      %p353 = scmp.le.s32.totalorder 2, %s11
      // Predicated region
      $region33: #{tpu_custom_call.1} parent=5 // pred_check
        %p354 = pneg %p353
      $region34: #{tpu_custom_call.1} parent=5 // pred_check_branch
        %356 = sbr.rel (%p354) target = $region36
      $region35: #{tpu_custom_call.1} parent=5 // pred_region
        %s357 = ssub.s32 %s11, 2
        // Predicated region
        $region37: #{tpu_custom_call.1} parent=35 // pred_check
          %p358 = pneg %p92
        $region38: #{tpu_custom_call.1} parent=35 // pred_check_branch
          %360 = sbr.rel (%p358) target = $region40
        $region39: #{tpu_custom_call.1} parent=35 // pred_region
          %s361 = sand.u32 %s77, 1
          %s362 = scalar_lea.sflag [#allocation3], %s361
          %s363 = sand.u32 %s77, 1
          %s364 = smul.addr %s363, 16
          %s365 = scalar_lea.vmem [#allocation2], %s364
          %366 = dma.done %s362, 256
        $region40: #{tpu_custom_call.1} parent=35 // pred_fallthru
          _
      $region36: #{tpu_custom_call.1} parent=5 // pred_fallthru
        _
    $region6: #{tpu_custom_call.1} parent=1 // loop_footer
      %s15 = sadd.s32 1, %s11
    $region7: #{tpu_custom_call.1} parent=1 // loop_footer_branch
      %10 = sbr.rel target = $region3
    $region8: #{tpu_custom_call.1} parent=1 // loop_exit
      _
    %367 = vsyncpa [#allocation3], 1
    %s368 = scalar_lea.sflag [#allocation3], 1
    %369 = vsyncpa %s368, 1

</llo_original>
